<compile_context>
chip_gen: v7x
topology: tpu7x:2x2x1
jax: 0.10.0
libtpu: 0.0.40
codegen_flags: <defaults>
</compile_context>

<pallas_src>
import functools

import jax
import jax.numpy as jnp
from jax.experimental import pallas as pl
from jax.experimental.pallas import tpu as pltpu


# ----------------------------------------------------------------------------
# Pallas kernel: out[g] = act(A[g] @ W[g or 0] + b), tiled over (G, M, N, K).
# A / W tiles are bf16 (MXU-native), accumulation is f32, bias + optional ReLU
# are fused into the epilogue of the K reduction.
# ----------------------------------------------------------------------------
def _mm_bias_act_kernel(x_ref, w_ref, b_ref, o_ref, acc_ref, *, relu):
    @pl.when(pl.program_id(3) == 0)
    def _():
        acc_ref[...] = jnp.zeros_like(acc_ref)

    acc_ref[...] += jnp.dot(x_ref[0], w_ref[0],
                            preferred_element_type=jnp.float32)

    @pl.when(pl.program_id(3) == pl.num_programs(3) - 1)
    def _():
        r = acc_ref[...] + b_ref[...]
        if relu:
            r = jnp.maximum(r, 0.0)
        o_ref[0] = r.astype(o_ref.dtype)


def _round_up(x, m):
    return ((x + m - 1) // m) * m


def _pick_tile(dim, unit, cap):
    """Pick (tile, padded_dim): tile is a multiple of `unit`, <= cap, and the
    dim is padded UP to a multiple of the tile.  Chooses the fewest grid steps,
    breaking ties by least padding, so awkward dims (e.g. 1026) get a snug
    single tile instead of tiny tiles or huge zero padding."""
    best = None
    for tile in range(unit, cap + 1, unit):
        padded = _round_up(dim, tile)
        key = (padded // tile, padded)
        if best is None or key < best[0]:
            best = (key, tile, padded)
    return best[1], best[2]


_TM_CAP = 256      # M tile cap when M has to be split
_TM_SINGLE = 1024  # use a single M tile when M rounds up to <= this
_TN_CAP = 512
_TK_CAP = 2048


def matmul_bias_act(a, w, b, *, relu, out_dtype=jnp.float32):
    """out[g] = act(a[g] @ w[g] + b).

    a: (M, K) or (G, M, K); w: (K, N) or (Gw, K, N) with Gw in {1, G}
    (weights should be pre-padded to x128 K/N at init so no copy happens here);
    b: None, (N,) or (1, N) float32."""
    squeeze = a.ndim == 2
    if squeeze:
        a = a[None]
    if w.ndim == 2:
        w = w[None]
    G, M, K = a.shape
    Gw, Kw, N = w.shape
    assert Kw == K and Gw in (1, G), (a.shape, w.shape)

    tn, Np = _pick_tile(N, 128, _TN_CAP)
    if K < 128:
        # Small-K heads: a full-dim lane block is legal, skip the K pad pass.
        tk = Kp = _round_up(K, 8)
    else:
        tk, Kp = _pick_tile(K, 128, _TK_CAP)
    m_min = _round_up(M, 16)
    if m_min <= _TM_CAP or (m_min <= _TM_SINGLE and Np // tn >= 2):
        tm, Mp = m_min, m_min          # weight streams from HBM exactly once
    else:
        tm, Mp = _pick_tile(M, 16, _TM_CAP)

    a = a.astype(jnp.bfloat16)
    w = w.astype(jnp.bfloat16)
    if (Mp, Kp) != (M, K):             # K pad is a no-op for every Flow layer
        a = jnp.pad(a, ((0, 0), (0, Mp - M), (0, Kp - K)))
    if (Kp, Np) != (K, N):             # no-op when weights are pre-padded
        w = jnp.pad(w, ((0, 0), (0, Kp - K), (0, Np - N)))
    if b is None:
        bp = jnp.zeros((1, Np), jnp.float32)
    else:
        bp = jnp.asarray(b, jnp.float32).reshape(1, -1)
        if bp.shape[1] != Np:
            bp = jnp.pad(bp, ((0, 0), (0, Np - bp.shape[1])))

    if Gw == G and G > 1:
        w_map = lambda g, i, j, k: (g, k, j)
    else:
        w_map = lambda g, i, j, k: (0, k, j)

    # Double-buffered footprint + accumulator; raise the scoped VMEM limit so
    # the larger tiles fit v5e's 16 MiB default while staying inside v7x.
    out_size = jnp.dtype(out_dtype).itemsize
    vmem = (2 * (tm * tk * 2 + tk * tn * 2 + tm * tn * out_size)
            + tm * tn * 4 + 2 * tn * 4)
    vmem_limit = int(min(64 * 2**20, max(32 * 2**20, 2 * vmem)))

    out = pl.pallas_call(
        functools.partial(_mm_bias_act_kernel, relu=relu),
        out_shape=jax.ShapeDtypeStruct((G, Mp, Np), out_dtype),
        grid_spec=pltpu.PrefetchScalarGridSpec(
            num_scalar_prefetch=0,
            grid=(G, Mp // tm, Np // tn, Kp // tk),
            in_specs=[
                pl.BlockSpec((1, tm, tk), lambda g, i, j, k: (g, i, k)),
                pl.BlockSpec((1, tk, tn), w_map),
                pl.BlockSpec((1, tn), lambda g, i, j, k: (0, j)),
            ],
            out_specs=pl.BlockSpec((1, tm, tn), lambda g, i, j, k: (g, i, j)),
            scratch_shapes=[pltpu.VMEM((tm, tn), jnp.float32)],
        ),
        compiler_params=pltpu.CompilerParams(
            dimension_semantics=("parallel", "parallel", "parallel",
                                 "arbitrary"),
            vmem_limit_bytes=vmem_limit),
    )(a, w, bp)
    if (Mp, Np) != (M, N):
        out = out[:, :M, :N]
    return out[0] if squeeze else out


# ----------------------------------------------------------------------------
# Layer wrappers (the matmul above is the Pallas kernel; the rest is glue).
# ----------------------------------------------------------------------------
def cat_pad(ts, align=128):
    """Channel concat zero-padded to a multiple of `align` in ONE op, so the
    decoder never needs a separate activation K-pad copy (consuming weights
    carry matching zero rows, added once at init)."""
    c = sum(t.shape[-1] for t in ts)
    pad = -c % align
    if pad:
        ts = list(ts) + [jnp.zeros(ts[0].shape[:-1] + (pad,), ts[0].dtype)]
    return jnp.concatenate(ts, axis=-1)


def conv2d(x, w2d, b2d, *, cout, kh=1, kw=1, padding=0, relu=True,
           out_dtype=jnp.bfloat16):
    """Conv2d (stride 1) + bias (+ ReLU) as one fused Pallas matmul.
    1x1 convs skip im2col entirely."""
    B, H, W, C = x.shape
    if kh == 1 and kw == 1:
        a = x.reshape(B * H * W, C)
        Ho, Wo = H, W
    else:
        xp = jnp.pad(x, ((0, 0), (padding, padding), (padding, padding),
                         (0, 0)))
        Ho = H + 2 * padding - kh + 1
        Wo = W + 2 * padding - kw + 1
        cols = [xp[:, di:di + Ho, dj:dj + Wo, :]
                for di in range(kh) for dj in range(kw)]
        a = jnp.concatenate(cols, axis=-1).reshape(B * Ho * Wo, kh * kw * C)
        # TODO(synk): do the 3x3 im2col in-kernel (kh/kw as reduction grid
        # axes) to avoid materializing the patch matrix at real resolutions.
    out = matmul_bias_act(a, w2d, b2d, relu=relu, out_dtype=out_dtype)
    if out.shape[-1] != cout:
        out = out[:, :cout]
    return out.reshape(B, Ho, Wo, cout)


def conv_transpose2d(x, wp, bp, *, cout, relu=True, out_dtype=jnp.bfloat16):
    """PyTorch ConvTranspose2d(k=4, stride=2, padding=1) + bias (+ ReLU).

    Sub-pixel (parity) decomposition: output pixel (2m+py, 2n+px) only sees a
    fixed 2x2 subset of the 4x4 taps, so the layer is 4 matmuls with K=4*cin
    (2x2 im2col) run as ONE batched Pallas call (leading grid axis = parity).
    The tap sum happens inside the f32 K-reduction; bias + ReLU are fused."""
    B, H, W, C = x.shape
    G, K, Np = wp.shape
    assert G == 4 and K == 4 * C, (x.shape, wp.shape)

    xp = jnp.pad(x, ((0, 0), (1, 1), (1, 1), (0, 0)))
    start = {0: (1, 0), 1: (1, 2)}      # parity -> padded slice start (d=0, 1)
    patches = []
    for py in (0, 1):
        for px in (0, 1):
            cols = [xp[:, start[py][dy]:start[py][dy] + H,
                       start[px][dx]:start[px][dx] + W, :]
                    for dy in (0, 1) for dx in (0, 1)]
            patches.append(jnp.concatenate(cols, axis=-1).reshape(B * H * W, K))
    # TODO(synk): the 2x2 im2col above is still materialized by XLA in HBM.
    a = jnp.stack(patches, axis=0)                       # (4, B*H*W, 4*C)

    out = matmul_bias_act(a, wp, bp, relu=relu, out_dtype=out_dtype)
    if out.shape[-1] != cout:
        out = out[..., :cout]
    out = out.reshape(2, 2, B, H, W, cout)               # (py, px, B, m, n, C)
    out = jnp.transpose(out, (2, 3, 0, 4, 1, 5))         # (B, m, py, n, px, C)
    return out.reshape(B, 2 * H, 2 * W, cout)


# Pure-JAX reference for the transposed conv (zero-dilate + flipped kernel),
# used only for the self-test in __main__.
def _deconv_ref(x, w, b):
    wf = w[::-1, ::-1, :, :]
    out = jax.lax.conv_general_dilated(
        x, wf, window_strides=(1, 1), padding=((2, 2), (2, 2)),
        lhs_dilation=(2, 2), dimension_numbers=("NHWC", "HWIO", "NHWC"))
    return jnp.maximum(out + b, 0.0)


# ----------------------------------------------------------------------------
# Parameters: deterministic synthetic init + one-time packing into the exact
# matrices the Pallas matmul consumes (pre-reshaped, pre-padded, bf16).
# ----------------------------------------------------------------------------
def _conv_init(key, kh, kw, cin, cout):
    k_w, k_b = jax.random.split(key)
    scale = (kh * kw * cin) ** -0.5
    w = jax.random.normal(k_w, (kh, kw, cin, cout), jnp.float32) * scale
    b = jax.random.normal(k_b, (cout,), jnp.float32) * 0.01
    return w, b


def _pack_conv(w, b):
    kh, kw, cin, cout = w.shape
    np_ = _round_up(cout, 128)
    w2d = w.reshape(kh * kw * cin, cout)
    if np_ != cout:
        w2d = jnp.pad(w2d, ((0, 0), (0, np_ - cout)))
    b2d = jnp.pad(b, (0, np_ - cout)).reshape(1, np_).astype(jnp.float32)
    return w2d.astype(jnp.bfloat16), b2d


_TAP = {0: (1, 3), 1: (2, 0)}   # output parity -> (kernel tap for d=0, d=1)


def _pack_deconv(w, b):
    """(4,4,cin,cout) HWIO -> per-parity (4, 4*cin_pad, cout_pad) bf16 matrices
    (row order matches the 2x2 im2col in conv_transpose2d) + (1, cout_pad) f32
    bias.  cin is padded to x128 so it lines up with cat_pad's zero channels."""
    kh, kw, cin, cout = w.shape
    assert (kh, kw) == (4, 4)
    cin_p = _round_up(cin, 128)
    cout_p = _round_up(cout, 128)
    groups = []
    for py in (0, 1):
        for px in (0, 1):
            rows = [jnp.pad(w[_TAP[py][dy], _TAP[px][dx]],
                            ((0, cin_p - cin), (0, cout_p - cout)))
                    for dy in (0, 1) for dx in (0, 1)]
            groups.append(jnp.concatenate(rows, axis=0))
    wp = jnp.stack(groups, axis=0).astype(jnp.bfloat16)  # (4, 4*cin_p, cout_p)
    bp = jnp.pad(b, (0, cout_p - cout)).reshape(1, cout_p).astype(jnp.float32)
    return wp, bp


_DC = [2048, 1024, 512, 256, 64, 32]   # deconv_channels


def init_flow_params(key):
    dc = _DC
    specs = {
        "conv_block": ("conv", 3, 3, 2048, 2048),
        "conv1x1_1": ("conv", 1, 1, dc[0] * 2, dc[0]),
        "conv1x1_2": ("conv", 1, 1, dc[1] * 2, dc[1]),
        "conv1x1_3": ("conv", 1, 1, dc[2] * 2, dc[2]),
        "conv1x1_4": ("conv", 1, 1, dc[3] * 2, dc[3]),
        "conv1x1_5": ("conv", 1, 1, dc[4] * 2, dc[4]),
        "decode1": ("deconv", 4, 4, dc[0], dc[1]),
        "decode2": ("deconv", 4, 4, dc[1] + 2, dc[2]),
        "decode3": ("deconv", 4, 4, dc[2] + 2, dc[3]),
        "decode4": ("deconv", 4, 4, dc[3] + 2, dc[4]),
        "decode5": ("deconv", 4, 4, dc[4] + 2, dc[5]),
        "output1": ("conv", 1, 1, dc[1], 2),
        "output2": ("conv", 1, 1, dc[2], 2),
        "output3": ("conv", 1, 1, dc[3], 2),
        "output4": ("conv", 1, 1, dc[4], 2),
        "output5": ("conv", 1, 1, dc[5], 2),
    }
    keys = jax.random.split(key, len(specs))
    params = {}
    for (name, (kind, kh, kw, cin, cout)), k in zip(specs.items(), keys):
        w, b = _conv_init(k, kh, kw, cin, cout)
        params[name] = _pack_conv(w, b) if kind == "conv" else _pack_deconv(w, b)
    return params


# ----------------------------------------------------------------------------
# Flow.forward  (intermediate activations bf16; flow outputs cast back to f32)
# ----------------------------------------------------------------------------
def flow_forward(params, features):
    """TODO(synk): BatchNorm (if present in the conv/deconv helpers) omitted.
    TODO(synk): output heads use no activation (flow can be negative); flip
    relu=True below if the real `conv(..., output=True, activation='relu')`
    helper actually applies it."""
    p = params
    dc = _DC
    feats = [x.astype(jnp.bfloat16) for x in features]

    f = conv2d(feats[-1], *p["conv_block"], cout=2048, kh=3, kw=3, padding=1)
    f = conv2d(cat_pad([f, feats[4]]), *p["conv1x1_1"], cout=dc[0])
    f = conv_transpose2d(f, *p["decode1"], cout=dc[1])
    f1 = conv2d(f, *p["output1"], cout=2, relu=False)
    f = conv2d(cat_pad([f, feats[3]]), *p["conv1x1_2"], cout=dc[1])
    f = conv_transpose2d(cat_pad([f, f1]), *p["decode2"], cout=dc[2])
    f2 = conv2d(f, *p["output2"], cout=2, relu=False)
    f = conv2d(cat_pad([f, feats[2]]), *p["conv1x1_3"], cout=dc[2])
    f = conv_transpose2d(cat_pad([f, f2]), *p["decode3"], cout=dc[3])
    f3 = conv2d(f, *p["output3"], cout=2, relu=False)
    f = conv2d(cat_pad([f, feats[1]]), *p["conv1x1_4"], cout=dc[3])
    f = conv_transpose2d(cat_pad([f, f3]), *p["decode4"], cout=dc[4])
    f4 = conv2d(f, *p["output4"], cout=2, relu=False)
    f = conv2d(cat_pad([f, feats[0]]), *p["conv1x1_5"], cout=dc[4])
    f = conv_transpose2d(cat_pad([f, f4]), *p["decode5"], cout=dc[5])
    f5 = conv2d(f, *p["output5"], cout=2, relu=False)
    return [o.astype(jnp.float32) for o in (f5, f4, f3, f2, f1)]


# ----------------------------------------------------------------------------
if __name__ == "__main__":
    root = jax.random.PRNGKey(0)
    k_feat, k_param, k_test = jax.random.split(root, 3)

    # --- Self-test 1: fused Pallas matmul + bias + ReLU (bf16 MXU, f32 acc). --
    ka, kw_, kb = jax.random.split(k_test, 3)
    a = jax.random.normal(ka, (37, 300), jnp.float32)
    w = jax.random.normal(kw_, (300, 70), jnp.float32)
    b = jax.random.normal(kb, (70,), jnp.float32)
    got = matmul_bias_act(a, w, b, relu=True, out_dtype=jnp.float32)
    ref = jnp.maximum(
        jnp.dot(a.astype(jnp.bfloat16), w.astype(jnp.bfloat16),
                preferred_element_type=jnp.float32) + b, 0.0)
    assert jnp.allclose(got, ref, rtol=2e-2, atol=2e-2)

    # --- Self-test 2: batched-parity transposed conv vs zero-dilation ref. ---
    kx, kw2, kb2 = jax.random.split(jax.random.fold_in(k_test, 1), 3)
    xt = jax.random.normal(kx, (1, 3, 3, 5), jnp.float32)
    wt = jax.random.normal(kw2, (4, 4, 5, 6), jnp.float32) * 0.1
    bt = jax.random.normal(kb2, (6,), jnp.float32) * 0.01
    wp_t, bp_t = _pack_deconv(wt, bt)                    # cin padded 5 -> 128
    xt_p = jnp.pad(xt, ((0, 0), (0, 0), (0, 0), (0, 128 - 5)))
    got_d = conv_transpose2d(xt_p, wp_t, bp_t, cout=6, relu=True,
                             out_dtype=jnp.float32)
    xq = xt.astype(jnp.bfloat16).astype(jnp.float32)
    wq = wt.astype(jnp.bfloat16).astype(jnp.float32)
    ref_d = _deconv_ref(xq, wq, bt)
    assert got_d.shape == (1, 6, 6, 6), got_d.shape
    assert jnp.allclose(got_d, ref_d, rtol=2e-2, atol=2e-2)

    # --- End-to-end Flow forward on a small synthetic feature pyramid. ---
    B, s = 2, 2   # batch, base spatial size of the deepest feature map
    feat_shapes = [
        (B, s * 16, s * 16, 64),
        (B, s * 8, s * 8, 256),
        (B, s * 4, s * 4, 512),
        (B, s * 2, s * 2, 1024),
        (B, s, s, 2048),
        (B, s, s, 2048),
    ]
    fkeys = jax.random.split(k_feat, len(feat_shapes))
    features = [jax.random.normal(k, sh, jnp.float32) * 0.1
                for k, sh in zip(fkeys, feat_shapes)]
    params = init_flow_params(k_param)

    outs = jax.jit(flow_forward)(params, features)
    outs = jax.block_until_ready(outs)

    expect = [(B, s * 32, s * 32, 2), (B, s * 16, s * 16, 2),
              (B, s * 8, s * 8, 2), (B, s * 4, s * 4, 2), (B, s * 2, s * 2, 2)]
    assert [tuple(o.shape) for o in outs] == expect, [o.shape for o in outs]
    assert all(o.dtype == jnp.float32 for o in outs)
    print("KERNEL_OK")
</pallas_src>

<mosaic_0001>
module attributes {stable_mosaic.version = 11 : i64} {
  func.func @_mm_bias_act_kernel(%arg0: i32, %arg1: i32, %arg2: i32, %arg3: i32, %arg4: memref<1x48x384xbf16, #tpu.memory_space<vmem>>, %arg5: memref<1x384x128xbf16, #tpu.memory_space<vmem>>, %arg6: memref<1x128xf32, #tpu.memory_space<vmem>>, %arg7: memref<1x48x128xf32, #tpu.memory_space<vmem>>, %arg8: memref<48x128xf32, #tpu.memory_space<vmem>>) attributes {dimension_semantics = [#tpu.dimension_semantics<parallel>, #tpu.dimension_semantics<parallel>, #tpu.dimension_semantics<parallel>, #tpu.dimension_semantics<arbitrary>], iteration_bounds = array<i64: 1, 1, 1, 1>, scalar_prefetch = 0 : i64, scratch_operands = 1 : i64, tpu.core_type = #tpu.core_type<tc>, window_params = [{transform_indices = @transform_0, window_bounds = array<i64: 1, 48, 384>}, {transform_indices = @transform_1, window_bounds = array<i64: 1, 384, 128>}, {transform_indices = @transform_2, window_bounds = array<i64: 1, 128>}, {transform_indices = @transform_3, window_bounds = array<i64: 1, 48, 128>}]} {
    %c0_i32 = arith.constant 0 : i32
    %0 = arith.cmpi eq, %arg3, %c0_i32 : i32
    %1 = arith.extui %0 : i1 to i32
    %c0_i32_0 = arith.constant 0 : i32
    %2 = arith.cmpi ne, %1, %c0_i32_0 : i32
    scf.if %2 {
      %cst_12 = arith.constant 0.000000e+00 : f32
      %14 = vector.broadcast %cst_12 : f32 to vector<48x128xf32>
      %c0_13 = arith.constant 0 : index
      %c0_14 = arith.constant 0 : index
      %15 = vector.load %arg8[%c0_13, %c0_14] : memref<48x128xf32, #tpu.memory_space<vmem>>, vector<48x128xf32>
      tpu.vector_store %arg8[%c0_13, %c0_14], %14 {strides = array<i32>} : memref<48x128xf32, #tpu.memory_space<vmem>>, vector<48x128xf32>,
    } else {
    }
    %c0 = arith.constant 0 : index
    %c0_1 = arith.constant 0 : index
    %3 = vector.load %arg8[%c0, %c0_1] : memref<48x128xf32, #tpu.memory_space<vmem>>, vector<48x128xf32>
    %c0_2 = arith.constant 0 : index
    %c0_3 = arith.constant 0 : index
    %c0_4 = arith.constant 0 : index
    %4 = vector.load %arg4[%c0_2, %c0_3, %c0_4] : memref<1x48x384xbf16, #tpu.memory_space<vmem>>, vector<1x48x384xbf16>
    %5 = vector.shape_cast %4 : vector<1x48x384xbf16> to vector<48x384xbf16>
    %c0_5 = arith.constant 0 : index
    %c0_6 = arith.constant 0 : index
    %c0_7 = arith.constant 0 : index
    %6 = vector.load %arg5[%c0_5, %c0_6, %c0_7] : memref<1x384x128xbf16, #tpu.memory_space<vmem>>, vector<1x384x128xbf16>
    %7 = vector.shape_cast %6 : vector<1x384x128xbf16> to vector<384x128xbf16>
    %cst = arith.constant dense<0.000000e+00> : vector<48x128xf32>
    %8 = tpu.matmul %5, %7, %cst {dimension_numbers = #tpu.dot_dimension_numbers<[1], [0], [0], [1], [0, 0, 1, 1], [], []>} : vector<48x384xbf16>, vector<384x128xbf16>, vector<48x128xf32> -> vector<48x128xf32>
    %9 = arith.addf %3, %8 : vector<48x128xf32>
    %c0_8 = arith.constant 0 : index
    %c0_9 = arith.constant 0 : index
    %10 = vector.load %arg8[%c0_8, %c0_9] : memref<48x128xf32, #tpu.memory_space<vmem>>, vector<48x128xf32>
    tpu.vector_store %arg8[%c0_8, %c0_9], %9 {strides = array<i32>} : memref<48x128xf32, #tpu.memory_space<vmem>>, vector<48x128xf32>,
    %c0_i32_10 = arith.constant 0 : i32
    %11 = arith.cmpi eq, %arg3, %c0_i32_10 : i32
    %12 = arith.extui %11 : i1 to i32
    %c0_i32_11 = arith.constant 0 : i32
    %13 = arith.cmpi ne, %12, %c0_i32_11 : i32
    scf.if %13 {
      %c0_12 = arith.constant 0 : index
      %c0_13 = arith.constant 0 : index
      %14 = vector.load %arg8[%c0_12, %c0_13] : memref<48x128xf32, #tpu.memory_space<vmem>>, vector<48x128xf32>
      %c0_14 = arith.constant 0 : index
      %c0_15 = arith.constant 0 : index
      %15 = vector.load %arg6[%c0_14, %c0_15] : memref<1x128xf32, #tpu.memory_space<vmem>>, vector<1x128xf32>
      %16 = vector.broadcast %15 : vector<1x128xf32> to vector<48x128xf32>
      %17 = arith.addf %14, %16 : vector<48x128xf32>
      %cst_16 = arith.constant 0.000000e+00 : f32
      %18 = vector.broadcast %cst_16 : f32 to vector<48x128xf32>
      %19 = arith.maximumf %17, %18 : vector<48x128xf32>
      %c0_17 = arith.constant 0 : index
      %c0_18 = arith.constant 0 : index
      %c0_19 = arith.constant 0 : index
      %20 = vector.load %arg7[%c0_17, %c0_18, %c0_19] : memref<1x48x128xf32, #tpu.memory_space<vmem>>, vector<1x48x128xf32>
      %21 = vector.shape_cast %20 : vector<1x48x128xf32> to vector<48x128xf32>
      %22 = vector.shape_cast %19 : vector<48x128xf32> to vector<1x48x128xf32>
      tpu.vector_store %arg7[%c0_17, %c0_18, %c0_19], %22 {strides = array<i32>} : memref<1x48x128xf32, #tpu.memory_space<vmem>>, vector<1x48x128xf32>,
    } else {
    }
    return
  }
  func.func @transform_0(%arg0: i32, %arg1: i32, %arg2: i32, %arg3: i32) -> (i32, i32, i32) {
    %c0_i32 = arith.constant 0 : i32
    return %arg0, %arg1, %arg3 : i32, i32, i32
  }
  func.func @transform_1(%arg0: i32, %arg1: i32, %arg2: i32, %arg3: i32) -> (i32, i32, i32) {
    %c0_i32 = arith.constant 0 : i32
    %c0_i32_0 = arith.constant 0 : i32
    return %c0_i32, %arg3, %arg2 : i32, i32, i32
  }
  func.func @transform_2(%arg0: i32, %arg1: i32, %arg2: i32, %arg3: i32) -> (i32, i32) {
    %c0_i32 = arith.constant 0 : i32
    %c0_i32_0 = arith.constant 0 : i32
    return %c0_i32, %arg2 : i32, i32
  }
  func.func @transform_3(%arg0: i32, %arg1: i32, %arg2: i32, %arg3: i32) -> (i32, i32, i32) {
    %c0_i32 = arith.constant 0 : i32
    return %arg0, %arg1, %arg2 : i32, i32, i32
  }
}

</mosaic_0001>

<llo_original>
// kernel: tpu_custom_call.1
$region0: #{tpu_custom_call.1}
  #allocation0 [shape = 'u32[]', space=smem, size = 0x4, offset = 0x4, fixed_abs, tag = 'smem constant byte address 0x4 - core index']
  #allocation1 [shape = 'u32[144,128]{1,0:T(1,128)}', space=vmem, size = 0x12000, scoped, tag = 'internal scratch']
  #allocation2 [shape = 'f32[48,128]{1,0:T(8,128)}', space=vmem, size = 0x6000, scoped, tag = 'scratch operand']
  %s0 = inlined_call_operand.hbm [shape: bf16[1,48,384], index: 0, kind: input, shape index: {}]
  %s1 = inlined_call_operand.hbm [shape: bf16[1,384,128], index: 1, kind: input, shape index: {}]
  %s2 = inlined_call_operand.vmem [shape: f32[1,128], index: 2, kind: input, shape index: {}]
  %s3 = inlined_call_operand.hbm [shape: f32[1,48,128], index: 3, kind: output, shape index: {}]
  %s4 = sld [smem:[#allocation0]]
  $region38: #{tpu_custom_call.1} parent=0
    _
  %s6 = ssub.s32 1, %s4
  %s7 = scalar_select 0, %s6, %s4
  $region1: #{tpu_custom_call.1} parent=0
    #allocation3 [shape = 'u8[36864]{0}', space=vmem, size = 0x9000, scoped, tag = 'input window, operand 0, single buffered']
    #allocation4 [shape = 's32[1]{0}', space=sflag, size = 0x4, scoped, tag = 'scoped memory for tpu_custom_call.1']
    #allocation5 [shape = 's32[1]{0}', space=sflag, size = 0x4, scoped, tag = 'scoped memory for tpu_custom_call.1']
    #allocation6 [shape = 'u8[98304]{0}', space=vmem, size = 0x18000, scoped, tag = 'input window, operand 1, single buffered']
    #allocation7 [shape = 's32[1]{0}', space=sflag, size = 0x4, scoped, tag = 'scoped memory for tpu_custom_call.1']
    #allocation8 [shape = 'u8[24576]{0}', space=vmem, size = 0x6000, scoped, tag = 'output window, operand 0, single buffered']
    %8 = vsyncpa [#allocation4], 0
    %9 = vsyncpa [#allocation7], 0
    %10 = vsyncpa [#allocation5], 0
    // Predicated region
    $region2: #{tpu_custom_call.1} parent=1 // pred_check
      _
    $region3: #{tpu_custom_call.1} parent=1 // pred_check_branch
      %12 = sbr.rel (0) target = $region5
    $region4: #{tpu_custom_call.1} parent=1 // pred_region
      %s14 = ssub.s32 1152, 1152
      %15 = vsyncadd [#allocation4], %s14
      %s16 = sshll.u32 [#allocation3], 4
      %s17 = int_to_ptr.vmem [resolvable:$true] %s16
      %22 = dma.hbm_to_vmem [thread:$0]  %s0, 1152, %s17, [#allocation4], 192, 192, 12
    $region5: #{tpu_custom_call.1} parent=1 // pred_fallthru
      _
    // Predicated region
    $region6: #{tpu_custom_call.1} parent=1 // pred_check
      _
    $region7: #{tpu_custom_call.1} parent=1 // pred_check_branch
      %24 = sbr.rel (0) target = $region9
    $region8: #{tpu_custom_call.1} parent=1 // pred_region
      %s26 = ssub.s32 3072, 3072
      %27 = vsyncadd [#allocation7], %s26
      %s28 = sshll.u32 [#allocation6], 4
      %s29 = int_to_ptr.vmem [resolvable:$true] %s28
      %34 = dma.hbm_to_vmem [thread:$0]  %s1, 3072, %s29, [#allocation7], 64, 64, 4
    $region9: #{tpu_custom_call.1} parent=1 // pred_fallthru
      _
    // Predicated region
    $region10: #{tpu_custom_call.1} parent=1 // pred_check
      _
    $region11: #{tpu_custom_call.1} parent=1 // pred_check_branch
      %36 = sbr.rel (0) target = $region13
    $region12: #{tpu_custom_call.1} parent=1 // pred_region
      _
    $region13: #{tpu_custom_call.1} parent=1 // pred_fallthru
      _
    // Predicated region
    $region14: #{tpu_custom_call.1} parent=1 // pred_check
      _
    $region15: #{tpu_custom_call.1} parent=1 // pred_check_branch
      %38 = sbr.rel (0) target = $region17
    $region16: #{tpu_custom_call.1} parent=1 // pred_region
      %39 = dma.done [#allocation4], 1152
    $region17: #{tpu_custom_call.1} parent=1 // pred_fallthru
      _
    // Predicated region
    $region18: #{tpu_custom_call.1} parent=1 // pred_check
      _
    $region19: #{tpu_custom_call.1} parent=1 // pred_check_branch
      %41 = sbr.rel (0) target = $region21
    $region20: #{tpu_custom_call.1} parent=1 // pred_region
      %42 = dma.done [#allocation7], 3072
    $region21: #{tpu_custom_call.1} parent=1 // pred_fallthru
      _
    %p44 = scmp.eq.s32.totalorder 0, 0
    // Predicated region
    $region22: #{tpu_custom_call.1} parent=1 // pred_check
      %p45 = pneg %p44
    $region23: #{tpu_custom_call.1} parent=1 // pred_check_branch
      %47 = sbr.rel (%p45) target = $region25
    $region24: #{tpu_custom_call.1} parent=1 // pred_region
      %48 = vst [vmem:[#allocation2] sm:$0xff] 0.0
      %49 = vst [vmem:[#allocation2 + $0x8] sm:$0xff] 0.0
      %50 = vst [vmem:[#allocation2 + $0x10] sm:$0xff] 0.0
      %51 = vst [vmem:[#allocation2 + $0x18] sm:$0xff] 0.0
      %52 = vst [vmem:[#allocation2 + $0x20] sm:$0xff] 0.0
      %53 = vst [vmem:[#allocation2 + $0x28] sm:$0xff] 0.0
    $region25: #{tpu_custom_call.1} parent=1 // pred_fallthru
      _
    %v54 = vld [vmem:[#allocation2] sm:$0xff]
    %v55 = vld [vmem:[#allocation2 + $0x8] sm:$0xff]
    %v56 = vld [vmem:[#allocation2 + $0x10] sm:$0xff]
    %v57 = vld [vmem:[#allocation2 + $0x18] sm:$0xff]
    %v58 = vld [vmem:[#allocation2 + $0x20] sm:$0xff]
    %v59 = vld [vmem:[#allocation2 + $0x28] sm:$0xff]
    %v60 = vld [vmem:[#allocation3] sm:$0xff]
    %v61 = vld [vmem:[#allocation3 + $0x8] sm:$0xf]
    %v62 = vld [vmem:[#allocation3 + $0xc] sm:$0xff]
    %v63 = vld [vmem:[#allocation3 + $0x14] sm:$0xf]
    %v64 = vld [vmem:[#allocation3 + $0x18] sm:$0xff]
    %v65 = vld [vmem:[#allocation3 + $0x20] sm:$0xf]
    %v66 = vld [vmem:[#allocation3 + $0x24] sm:$0xff]
    %v67 = vld [vmem:[#allocation3 + $0x2c] sm:$0xf]
    %v68 = vld [vmem:[#allocation3 + $0x30] sm:$0xff]
    %v69 = vld [vmem:[#allocation3 + $0x38] sm:$0xf]
    %v70 = vld [vmem:[#allocation3 + $0x3c] sm:$0xff]
    %v71 = vld [vmem:[#allocation3 + $0x44] sm:$0xf]
    %v72 = vld [vmem:[#allocation6] sm:$0xf]
    %v73 = vld [vmem:[#allocation6 + $0x4] sm:$0xf]
    %v74 = vld [vmem:[#allocation6 + $0x8] sm:$0xf]
    %v75 = vld [vmem:[#allocation6 + $0xc] sm:$0xf]
    %v76 = vld [vmem:[#allocation6 + $0x10] sm:$0xf]
    %v77 = vld [vmem:[#allocation6 + $0x14] sm:$0xf]
    %v78 = vld [vmem:[#allocation6 + $0x18] sm:$0xf]
    %v79 = vld [vmem:[#allocation6 + $0x1c] sm:$0xf]
    %v80 = vld [vmem:[#allocation6 + $0x20] sm:$0xf]
    %v81 = vld [vmem:[#allocation6 + $0x24] sm:$0xf]
    %v82 = vld [vmem:[#allocation6 + $0x28] sm:$0xf]
    %v83 = vld [vmem:[#allocation6 + $0x2c] sm:$0xf]
    %v84 = vld [vmem:[#allocation6 + $0x30] sm:$0xf]
    %v85 = vld [vmem:[#allocation6 + $0x34] sm:$0xf]
    %v86 = vld [vmem:[#allocation6 + $0x38] sm:$0xf]
    %v87 = vld [vmem:[#allocation6 + $0x3c] sm:$0xf]
    %v88 = vld [vmem:[#allocation6 + $0x40] sm:$0xf]
    %v89 = vld [vmem:[#allocation6 + $0x44] sm:$0xf]
    %v90 = vld [vmem:[#allocation6 + $0x48] sm:$0xf]
    %v91 = vld [vmem:[#allocation6 + $0x4c] sm:$0xf]
    %v92 = vld [vmem:[#allocation6 + $0x50] sm:$0xf]
    %v93 = vld [vmem:[#allocation6 + $0x54] sm:$0xf]
    %v94 = vld [vmem:[#allocation6 + $0x58] sm:$0xf]
    %v95 = vld [vmem:[#allocation6 + $0x5c] sm:$0xf]
    %v96 = vld [vmem:[#allocation6 + $0x60] sm:$0xf]
    %v97 = vld [vmem:[#allocation6 + $0x64] sm:$0xf]
    %v98 = vld [vmem:[#allocation6 + $0x68] sm:$0xf]
    %v99 = vld [vmem:[#allocation6 + $0x6c] sm:$0xf]
    %v100 = vld [vmem:[#allocation6 + $0x70] sm:$0xf]
    %v101 = vld [vmem:[#allocation6 + $0x74] sm:$0xf]
    %v102 = vld [vmem:[#allocation6 + $0x78] sm:$0xf]
    %v103 = vld [vmem:[#allocation6 + $0x7c] sm:$0xf]
    %v104 = vld [vmem:[#allocation6 + $0x80] sm:$0xf]
    %v105 = vld [vmem:[#allocation6 + $0x84] sm:$0xf]
    %v106 = vld [vmem:[#allocation6 + $0x88] sm:$0xf]
    %v107 = vld [vmem:[#allocation6 + $0x8c] sm:$0xf]
    %v108 = vld [vmem:[#allocation6 + $0x90] sm:$0xf]
    %v109 = vld [vmem:[#allocation6 + $0x94] sm:$0xf]
    %v110 = vld [vmem:[#allocation6 + $0x98] sm:$0xf]
    %v111 = vld [vmem:[#allocation6 + $0x9c] sm:$0xf]
    %v112 = vld [vmem:[#allocation6 + $0xa0] sm:$0xf]
    %v113 = vld [vmem:[#allocation6 + $0xa4] sm:$0xf]
    %v114 = vld [vmem:[#allocation6 + $0xa8] sm:$0xf]
    %v115 = vld [vmem:[#allocation6 + $0xac] sm:$0xf]
    %v116 = vld [vmem:[#allocation6 + $0xb0] sm:$0xf]
    %v117 = vld [vmem:[#allocation6 + $0xb4] sm:$0xf]
    %v118 = vld [vmem:[#allocation6 + $0xb8] sm:$0xf]
    %v119 = vld [vmem:[#allocation6 + $0xbc] sm:$0xf]
    %v132 = vunpack.c.l.b16 %v60
    %v133 = vunpack.c.h.b16 %v60
    %v134 = vunpack.c.l.b16 %v61
    %v135 = vunpack.c.l.b16 %v62
    %v136 = vunpack.c.h.b16 %v62
    %v137 = vunpack.c.l.b16 %v63
    %v138 = vunpack.c.l.b16 %v64
    %v139 = vunpack.c.h.b16 %v64
    %v140 = vunpack.c.l.b16 %v65
    %v141 = vunpack.c.l.b16 %v66
    %v142 = vunpack.c.h.b16 %v66
    %v143 = vunpack.c.l.b16 %v67
    %v144 = vunpack.c.l.b16 %v68
    %v145 = vunpack.c.h.b16 %v68
    %v146 = vunpack.c.l.b16 %v69
    %v147 = vunpack.c.l.b16 %v70
    %v148 = vunpack.c.h.b16 %v70
    %v149 = vunpack.c.l.b16 %v71
    %v150 = vpack.c.b16 %v135, %v132
    %v151 = vpack.c.b16 %v136, %v133
    %v152 = vpack.c.b16 %v137, %v134
    %v153 = vpack.c.b16 %v141, %v138
    %v154 = vpack.c.b16 %v142, %v139
    %v155 = vpack.c.b16 %v143, %v140
    %v156 = vpack.c.b16 %v147, %v144
    %v157 = vpack.c.b16 %v148, %v145
    %v158 = vpack.c.b16 %v149, %v146
    %v216 = vunpack.c.l.b16 %v72
    %v217 = vunpack.c.l.b16 %v73
    %v218 = vunpack.c.l.b16 %v74
    %v219 = vunpack.c.l.b16 %v75
    %v220 = vunpack.c.l.b16 %v76
    %v221 = vunpack.c.l.b16 %v77
    %v222 = vunpack.c.l.b16 %v78
    %v223 = vunpack.c.l.b16 %v79
    %v224 = vunpack.c.l.b16 %v80
    %v225 = vunpack.c.l.b16 %v81
    %v226 = vunpack.c.l.b16 %v82
    %v227 = vunpack.c.l.b16 %v83
    %v228 = vunpack.c.l.b16 %v84
    %v229 = vunpack.c.l.b16 %v85
    %v230 = vunpack.c.l.b16 %v86
    %v231 = vunpack.c.l.b16 %v87
    %v232 = vunpack.c.l.b16 %v88
    %v233 = vunpack.c.l.b16 %v89
    %v234 = vunpack.c.l.b16 %v90
    %v235 = vunpack.c.l.b16 %v91
    %v236 = vunpack.c.l.b16 %v92
    %v237 = vunpack.c.l.b16 %v93
    %v238 = vunpack.c.l.b16 %v94
    %v239 = vunpack.c.l.b16 %v95
    %v240 = vunpack.c.l.b16 %v96
    %v241 = vunpack.c.l.b16 %v97
    %v242 = vunpack.c.l.b16 %v98
    %v243 = vunpack.c.l.b16 %v99
    %v244 = vunpack.c.l.b16 %v100
    %v245 = vunpack.c.l.b16 %v101
    %v246 = vunpack.c.l.b16 %v102
    %v247 = vunpack.c.l.b16 %v103
    %v248 = vunpack.c.l.b16 %v104
    %v249 = vunpack.c.l.b16 %v105
    %v250 = vunpack.c.l.b16 %v106
    %v251 = vunpack.c.l.b16 %v107
    %v252 = vunpack.c.l.b16 %v108
    %v253 = vunpack.c.l.b16 %v109
    %v254 = vunpack.c.l.b16 %v110
    %v255 = vunpack.c.l.b16 %v111
    %v256 = vunpack.c.l.b16 %v112
    %v257 = vunpack.c.l.b16 %v113
    %v258 = vunpack.c.l.b16 %v114
    %v259 = vunpack.c.l.b16 %v115
    %v260 = vunpack.c.l.b16 %v116
    %v261 = vunpack.c.l.b16 %v117
    %v262 = vunpack.c.l.b16 %v118
    %v263 = vunpack.c.l.b16 %v119
    %v264 = vpack.c.b16 %v217, %v216
    %v265 = vpack.c.b16 %v219, %v218
    %v266 = vpack.c.b16 %v221, %v220
    %v267 = vpack.c.b16 %v223, %v222
    %v268 = vpack.c.b16 %v225, %v224
    %v269 = vpack.c.b16 %v227, %v226
    %v270 = vpack.c.b16 %v229, %v228
    %v271 = vpack.c.b16 %v231, %v230
    %v272 = vpack.c.b16 %v233, %v232
    %v273 = vpack.c.b16 %v235, %v234
    %v274 = vpack.c.b16 %v237, %v236
    %v275 = vpack.c.b16 %v239, %v238
    %v276 = vpack.c.b16 %v241, %v240
    %v277 = vpack.c.b16 %v243, %v242
    %v278 = vpack.c.b16 %v245, %v244
    %v279 = vpack.c.b16 %v247, %v246
    %v280 = vpack.c.b16 %v249, %v248
    %v281 = vpack.c.b16 %v251, %v250
    %v282 = vpack.c.b16 %v253, %v252
    %v283 = vpack.c.b16 %v255, %v254
    %v284 = vpack.c.b16 %v257, %v256
    %v285 = vpack.c.b16 %v259, %v258
    %v286 = vpack.c.b16 %v261, %v260
    %v287 = vpack.c.b16 %v263, %v262
    %312 = vmatprep.subr.bf16.mxu0 0
    %313 = vmatpush1.bf16.msra.mxu0 %v264
    %314 = vmatprep.subr.bf16.mxu0 0
    %315 = vmatpush1.bf16.msra.mxu0 %v265
    %316 = vmatprep.subr.bf16.mxu0 0
    %317 = vmatpush1.bf16.msra.mxu0 %v266
    %318 = vmatprep.subr.bf16.mxu0 0
    %319 = vmatpush1.bf16.msra.mxu0 %v267
    %320 = vmatprep.subr.bf16.mxu0 0
    %321 = vmatpush1.bf16.msra.mxu0 %v268
    %322 = vmatprep.subr.bf16.mxu0 0
    %323 = vmatpush1.bf16.msra.mxu0 %v269
    %324 = vmatprep.subr.bf16.mxu0 0
    %325 = vmatpush1.bf16.msra.mxu0 %v270
    %326 = vmatprep.subr.bf16.mxu0 0
    %327 = vmatpush1.bf16.msra.mxu0 %v271
    %328 = vmatprep.subr.bf16.mxu0 0
    %329 = vmatpush1.bf16.msra.mxu0 %v272
    %330 = vmatprep.subr.bf16.mxu0 0
    %331 = vmatpush1.bf16.msra.mxu0 %v273
    %332 = vmatprep.subr.bf16.mxu0 0
    %333 = vmatpush1.bf16.msra.mxu0 %v274
    %334 = vmatprep.subr.bf16.mxu0 0
    %335 = vmatpush1.bf16.msra.mxu0 %v275
    %336 = vmatprep.subr.bf16.mxu0 0
    %337 = vmatpush1.bf16.msra.mxu0 %v276
    %338 = vmatprep.subr.bf16.mxu0 0
    %339 = vmatpush1.bf16.msra.mxu0 %v277
    %340 = vmatprep.subr.bf16.mxu0 0
    %341 = vmatpush1.bf16.msra.mxu0 %v278
    %342 = vmatprep.subr.bf16.mxu0 0
    %343 = vmatpush1.bf16.msra.mxu0 %v279
    %344 = vmatprep.mubr.bf16.mxu0 %v151
    %345 = vmatmul.mubr.bf16.gmra.mrb[0].mxu0 %v150
    %v346 = vpop.f32.mrb[0].mxu0
    %v347 = vadd.f32 0.0, %v346
    %v348 = vpop.f32.mrb[0].mxu0
    %v349 = vpop.f32.mrb[0].mxu0
    %v350 = vadd.f32 0.0, %v349
    %v351 = vpop.f32.mrb[0].mxu0
    %352 = vmatprep.mubr.bf16.mxu0 %v154
    %353 = vmatmul.mubr.bf16.gmra.mrb[0].mxu0 %v153
    %v354 = vpop.f32.mrb[0].mxu0
    %v355 = vadd.f32 0.0, %v354
    %v356 = vpop.f32.mrb[0].mxu0
    %v357 = vpop.f32.mrb[0].mxu0
    %v358 = vadd.f32 0.0, %v357
    %v359 = vpop.f32.mrb[0].mxu0
    %360 = vmatprep.mubr.bf16.mxu0 %v157
    %361 = vmatmul.mubr.bf16.gmra.mrb[0].mxu0 %v156
    %v362 = vpop.f32.mrb[0].mxu0
    %v363 = vadd.f32 0.0, %v362
    %v364 = vpop.f32.mrb[0].mxu0
    %v365 = vpop.f32.mrb[0].mxu0
    %v366 = vadd.f32 0.0, %v365
    %v367 = vpop.f32.mrb[0].mxu0
    %368 = vdwg.mxu0
    %369 = vmatprep.subr.bf16.mxu0 0
    %370 = vmatpush1.bf16.msra.mxu0 %v280
    %371 = vmatprep.subr.bf16.mxu0 0
    %372 = vmatpush1.bf16.msra.mxu0 %v281
    %373 = vmatprep.subr.bf16.mxu0 0
    %374 = vmatpush1.bf16.msra.mxu0 %v282
    %375 = vmatprep.subr.bf16.mxu0 0
    %376 = vmatpush1.bf16.msra.mxu0 %v283
    %377 = vmatprep.subr.bf16.mxu0 0
    %378 = vmatpush1.bf16.msra.mxu0 %v284
    %379 = vmatprep.subr.bf16.mxu0 0
    %380 = vmatpush1.bf16.msra.mxu0 %v285
    %381 = vmatprep.subr.bf16.mxu0 0
    %382 = vmatpush1.bf16.msra.mxu0 %v286
    %383 = vmatprep.subr.bf16.mxu0 0
    %384 = vmatpush1.bf16.msra.mxu0 %v287
    %385 = vmatprep.subr.bf16.mxu0 0
    %386 = vmatpush1.bf16.msra.mxu0 0
    %387 = vmatprep.subr.bf16.mxu0 0
    %388 = vmatpush1.bf16.msra.mxu0 0
    %389 = vmatprep.subr.bf16.mxu0 0
    %390 = vmatpush1.bf16.msra.mxu0 0
    %391 = vmatprep.subr.bf16.mxu0 0
    %392 = vmatpush1.bf16.msra.mxu0 0
    %393 = vmatprep.subr.bf16.mxu0 0
    %394 = vmatpush1.bf16.msra.mxu0 0
    %395 = vmatprep.subr.bf16.mxu0 0
    %396 = vmatpush1.bf16.msra.mxu0 0
    %397 = vmatprep.subr.bf16.mxu0 0
    %398 = vmatpush1.bf16.msra.mxu0 0
    %399 = vmatprep.subr.bf16.mxu0 0
    %400 = vmatpush1.bf16.msra.mxu0 0
    %401 = vmatprep.mubr.bf16.mxu0 0
    %402 = vmatmul.mubr.bf16.gmra.mrb[0].mxu0 %v152
    %v403 = vpop.f32.mrb[0].mxu0
    %v404 = vadd.f32 %v347, %v403
    %v405 = vpop.f32.mrb[0].mxu0
    %v406 = vpop.f32.mrb[0].mxu0
    %v407 = vadd.f32 %v350, %v406
    %v408 = vpop.f32.mrb[0].mxu0
    %409 = vmatprep.mubr.bf16.mxu0 0
    %410 = vmatmul.mubr.bf16.gmra.mrb[0].mxu0 %v155
    %v411 = vpop.f32.mrb[0].mxu0
    %v412 = vadd.f32 %v355, %v411
    %v413 = vpop.f32.mrb[0].mxu0
    %v414 = vpop.f32.mrb[0].mxu0
    %v415 = vadd.f32 %v358, %v414
    %v416 = vpop.f32.mrb[0].mxu0
    %417 = vmatprep.mubr.bf16.mxu0 0
    %418 = vmatmul.mubr.bf16.gmra.mrb[0].mxu0 %v158
    %v419 = vpop.f32.mrb[0].mxu0
    %v420 = vadd.f32 %v363, %v419
    %v421 = vpop.f32.mrb[0].mxu0
    %v422 = vpop.f32.mrb[0].mxu0
    %v423 = vadd.f32 %v366, %v422
    %v424 = vpop.f32.mrb[0].mxu0
    %425 = vdwg.mxu0
    %v426 = vadd.f32 %v54, %v404
    %v427 = vadd.f32 %v55, %v407
    %v428 = vadd.f32 %v56, %v412
    %v429 = vadd.f32 %v57, %v415
    %v430 = vadd.f32 %v58, %v420
    %v431 = vadd.f32 %v59, %v423
    %432 = vst [vmem:[#allocation2] sm:$0xff] %v426
    %433 = vst [vmem:[#allocation2 + $0x8] sm:$0xff] %v427
    %434 = vst [vmem:[#allocation2 + $0x10] sm:$0xff] %v428
    %435 = vst [vmem:[#allocation2 + $0x18] sm:$0xff] %v429
    %436 = vst [vmem:[#allocation2 + $0x20] sm:$0xff] %v430
    %437 = vst [vmem:[#allocation2 + $0x28] sm:$0xff] %v431
    // Predicated region
    $region26: #{tpu_custom_call.1} parent=1 // pred_check
      %p438 = pneg %p44
    $region27: #{tpu_custom_call.1} parent=1 // pred_check_branch
      %440 = sbr.rel (%p438) target = $region29
    $region28: #{tpu_custom_call.1} parent=1 // pred_region
      %v441 = vld [vmem:[#allocation2] sm:$0xff]
      %v442 = vld [vmem:[#allocation2 + $0x8] sm:$0xff]
      %v443 = vld [vmem:[#allocation2 + $0x10] sm:$0xff]
      %v444 = vld [vmem:[#allocation2 + $0x18] sm:$0xff]
      %v445 = vld [vmem:[#allocation2 + $0x20] sm:$0xff]
      %v446 = vld [vmem:[#allocation2 + $0x28] sm:$0xff]
      %v447 = vld [vmem:[%s2] sm:$0x1]
      %v449 = vlaneseq
      %v450 = vshrl.u32 %v449, 7
      %v451 = vsub.s32 0, %v450
      %v452 = vrot.slane %v447, %v451
      %v454 = vadd.f32 %v441, %v452
      %v455 = vadd.f32 %v442, %v452
      %v456 = vadd.f32 %v443, %v452
      %v457 = vadd.f32 %v444, %v452
      %v458 = vadd.f32 %v445, %v452
      %v459 = vadd.f32 %v446, %v452
      %v460 = vmax.f32 %v454, 0.0
      %v461 = vmax.f32 %v455, 0.0
      %v462 = vmax.f32 %v456, 0.0
      %v463 = vmax.f32 %v457, 0.0
      %v464 = vmax.f32 %v458, 0.0
      %v465 = vmax.f32 %v459, 0.0
      %466 = vst [vmem:[#allocation8] sm:$0xff] %v460
      %467 = vst [vmem:[#allocation8 + $0x8] sm:$0xff] %v461
      %468 = vst [vmem:[#allocation8 + $0x10] sm:$0xff] %v462
      %469 = vst [vmem:[#allocation8 + $0x18] sm:$0xff] %v463
      %470 = vst [vmem:[#allocation8 + $0x20] sm:$0xff] %v464
      %471 = vst [vmem:[#allocation8 + $0x28] sm:$0xff] %v465
    $region29: #{tpu_custom_call.1} parent=1 // pred_fallthru
      _
    // Predicated region
    $region30: #{tpu_custom_call.1} parent=1 // pred_check
      _
    $region31: #{tpu_custom_call.1} parent=1 // pred_check_branch
      %473 = sbr.rel (0) target = $region33
    $region32: #{tpu_custom_call.1} parent=1 // pred_region
      %s475 = ssub.s32 768, 768
      %476 = vsyncadd [#allocation5], %s475
      %s477 = sshll.u32 [#allocation8], 4
      %s478 = int_to_ptr.vmem [resolvable:$true] %s477
      %483 = dma.vmem_to_hbm [thread:$0]  %s478, 768, %s3, [#allocation5], 128, 128, 8
    $region33: #{tpu_custom_call.1} parent=1 // pred_fallthru
      _
    // Predicated region
    $region34: #{tpu_custom_call.1} parent=1 // pred_check
      _
    $region35: #{tpu_custom_call.1} parent=1 // pred_check_branch
      %485 = sbr.rel (0) target = $region37
    $region36: #{tpu_custom_call.1} parent=1 // pred_region
      %486 = dma.done [#allocation5], 768
    $region37: #{tpu_custom_call.1} parent=1 // pred_fallthru
      _
    %487 = vsyncpa [#allocation4], 1
    %488 = vsyncpa [#allocation7], 1
    %489 = vsyncpa [#allocation5], 1

</llo_original>
